<compile_context>
chip_gen: v5e
topology: v5e:2x2
jax: 0.10.0
libtpu: 0.0.40
codegen_flags: <defaults>
</compile_context>

<pallas_src>
import jax
import jax.numpy as jnp
from jax.experimental import pallas as pl
from jax.experimental.pallas import tpu as pltpu


def projection_kernel(x_ref, w_ref, b_ref, o_ref):
    # x_ref: (Bb, TT, C)  time-major activations (LN affine already folded into w/b)
    # w_ref: (O, C)       folded 1x1-conv weight  (W * gamma), compute dtype
    # b_ref: (O, 1)       folded conv bias        (b + W @ beta), f32
    # o_ref: (Bb, O, TT)  output block -- written directly in the (B, O, T) layout
    w = w_ref[...]
    bias = b_ref[...].astype(jnp.float32)
    n_b = x_ref.shape[0]

    # Small static unroll over the batch sub-block; iterations are independent so the
    # scheduler can interleave them, and each matmul keeps a lane-dense (O, TT) result.
    for bi in range(n_b):
        x = x_ref[bi].astype(jnp.float32)                       # (TT, C)

        # LayerNorm stats (two-pass (x-mean)^2 form for numerical stability).
        mean = jnp.mean(x, axis=-1, keepdims=True)
        xc = x - mean
        var = jnp.mean(xc * xc, axis=-1, keepdims=True)
        rstd = jax.lax.rsqrt(var + 1e-5)
        normed = (xc * rstd).astype(w.dtype)                    # (TT, C)
        # TODO(synk): on v6e/v7x a packed-bf16 scale/shift epilogue would double VPU
        # throughput; kept in f32 here for accuracy.

        # 1x1 Conv1d == channel matmul on the MXU.  Contract C with C so the result is
        # (O, TT): lane-dense output block, no transpose of the result needed.
        # TODO(synk): if lowering shows a relayout of the large (TT, C) operand, switch to
        # normed @ W^T followed by a small (TT, O) transpose instead.
        y = jax.lax.dot_general(
            w, normed,
            dimension_numbers=(((1,), (1,)), ((), ())),
            preferred_element_type=jnp.float32)                 # (O, TT)
        y = y + bias

        # mask_nonlinear: ReLU
        # TODO(synk): the module accepts an arbitrary Callable; only ReLU is implemented.
        o_ref[bi] = jnp.maximum(y, 0.0).astype(o_ref.dtype)


def _round_up(n: int, m: int) -> int:
    return ((n + m - 1) // m) * m


def _padded_block_bytes(shape, dtype) -> int:
    """Physical VMEM footprint of one block: minor dim pads to 128 lanes,
    second-minor pads to the dtype's sublane multiple (8 for 4B, 16 for 2B, 32 for 1B)."""
    itemsize = jnp.dtype(dtype).itemsize
    sublane = {4: 8, 2: 16, 1: 32}.get(itemsize, 8)
    dims = list(shape)
    dims[-1] = _round_up(dims[-1], 128)
    if len(dims) >= 2:
        dims[-2] = _round_up(dims[-2], sublane)
    n = 1
    for d in dims:
        n *= d
    return n * itemsize


def projection_forward(x, gamma, beta, conv_w, conv_b, *, num_sources, out_dim,
                       max_tile_t=2048, max_batch_block=8, compute_dtype=None,
                       vmem_budget_bytes=24 * 1024 * 1024,     # padded working set (v7x-safe)
                       vmem_limit_bytes=32 * 1024 * 1024,      # raise to 64 MiB on v6e
                       core_parallel_batch=False):             # set True on v7x (2 TCs)
    """x: (B, T, C) -> (B, num_sources*out_dim, T), matching the PyTorch module."""
    B, T, C = x.shape
    O = num_sources * out_dim
    if compute_dtype is None:
        # bf16 inputs -> bf16 matmul operands (MXU-native); LN stats stay f32 in-kernel.
        compute_dtype = x.dtype

    def vmem_bytes(bb, tt):
        # double-buffered x / out blocks + (conservatively double-buffered) params
        return (2 * _padded_block_bytes((bb, tt, C), x.dtype)
                + 2 * _padded_block_bytes((bb, O, tt), x.dtype)
                + 2 * (_padded_block_bytes((O, C), compute_dtype)
                       + _padded_block_bytes((O, 1), jnp.float32)))

    # ---- choose the T tile (lane dim of the output block) ----
    if T < 128:
        # Full-extent T block: always layout-legal; below 128 lanes the output stores are
        # masked either way and the whole output stream is tiny.
        tile_t = T
    else:
        tile_t = 128
        while (tile_t * 2 <= max_tile_t and tile_t * 2 <= T
               and vmem_bytes(1, tile_t * 2) <= vmem_budget_bytes):
            tile_t *= 2

    # ---- choose the batch sub-block (amortize per-grid-step overhead) ----
    batch_block = 1
    for bb in range(min(B, max_batch_block), 0, -1):
        if B % bb == 0 and vmem_bytes(bb, tile_t) <= vmem_budget_bytes:
            batch_block = bb
            break

    grid = (B // batch_block, pl.cdiv(T, tile_t))

    # ---- fold the LayerNorm affine into the conv weight/bias (done once, in the wrapper) ----
    w2d = conv_w.reshape(O, C).astype(jnp.float32)              # Conv1d weight (O, C, 1) -> (O, C)
    gamma_row = gamma.reshape(1, C).astype(jnp.float32)
    beta_col = beta.reshape(C, 1).astype(jnp.float32)
    w_fold = (w2d * gamma_row).astype(compute_dtype)            # (O, C)
    b_fold = conv_b.reshape(O, 1).astype(jnp.float32) + w2d @ beta_col   # (O, 1)

    batch_sem = pltpu.CORE_PARALLEL if core_parallel_batch else "parallel"

    out = pl.pallas_call(
        projection_kernel,
        out_shape=jax.ShapeDtypeStruct((B, O, T), x.dtype),
        grid_spec=pltpu.PrefetchScalarGridSpec(
            num_scalar_prefetch=0,
            grid=grid,
            in_specs=[
                pl.BlockSpec((batch_block, tile_t, C), lambda b, t: (b, t, 0)),  # x block
                pl.BlockSpec((O, C), lambda b, t: (0, 0)),                       # folded weight
                pl.BlockSpec((O, 1), lambda b, t: (0, 0)),                       # folded bias
            ],
            out_specs=pl.BlockSpec((batch_block, O, tile_t), lambda b, t: (b, 0, t)),
        ),
        compiler_params=pltpu.CompilerParams(
            dimension_semantics=(batch_sem, "parallel"),
            vmem_limit_bytes=vmem_limit_bytes),
    )(x, w_fold, b_fold)
    return out


def projection_reference(x, gamma, beta, conv_w, conv_b, *, num_sources, out_dim):
    """Pure-JAX reference mirroring the PyTorch forward (all-f32)."""
    xf = x.astype(jnp.float32)
    mean = jnp.mean(xf, axis=-1, keepdims=True)
    var = jnp.mean((xf - mean) ** 2, axis=-1, keepdims=True)
    normed = (xf - mean) / jnp.sqrt(var + 1e-5) * gamma.astype(jnp.float32) \
        + beta.astype(jnp.float32)                                        # (B, T, C)
    O = num_sources * out_dim
    w = conv_w.reshape(O, -1).astype(jnp.float32)                         # (O, C)
    y = jnp.einsum("btc,oc->bot", normed, w,
                   precision=jax.lax.Precision.HIGHEST) \
        + conv_b.astype(jnp.float32)[None, :, None]
    return jnp.maximum(y, 0.0)


if __name__ == "__main__":
    key = jax.random.PRNGKey(0)

    bottleneck_dim = 32
    out_dim = 8
    num_sources = 2
    O = num_sources * out_dim

    kw, kb, kg, kbt, kx1, kx2, kx3 = jax.random.split(key, 7)
    conv_w = 0.1 * jax.random.normal(kw, (O, bottleneck_dim, 1), dtype=jnp.float32)
    conv_b = 0.1 * jax.random.normal(kb, (O,), dtype=jnp.float32)
    # Non-default LayerNorm affine so the weight/bias folding is actually exercised.
    gamma = 1.0 + 0.1 * jax.random.normal(kg, (bottleneck_dim,), dtype=jnp.float32)
    beta = 0.1 * jax.random.normal(kbt, (bottleneck_dim,), dtype=jnp.float32)

    # (name, (B, T), dtype, abs tolerance) -- covers small-T, ragged multi-tile T, and bf16.
    configs = [
        ("f32_small_T", (2, 16), jnp.float32, 3e-3),
        ("f32_ragged_T", (2, 300), jnp.float32, 3e-3),
        ("bf16", (4, 192), jnp.bfloat16, 1e-1),
    ]
    x_keys = [kx1, kx2, kx3]

    for (name, (B, T), dtype, tol), kx in zip(configs, x_keys):
        x = jax.random.normal(kx, (B, T, bottleneck_dim), dtype=jnp.float32).astype(dtype)

        out = projection_forward(x, gamma, beta, conv_w, conv_b,
                                 num_sources=num_sources, out_dim=out_dim)
        out = jax.block_until_ready(out)
        assert out.shape == (B, O, T), (name, out.shape)

        ref = projection_reference(x, gamma, beta, conv_w, conv_b,
                                   num_sources=num_sources, out_dim=out_dim)
        err = float(jnp.max(jnp.abs(out.astype(jnp.float32) - ref)))
        assert err < tol, f"{name}: max abs err {err} >= {tol}"

    print("KERNEL_OK")
</pallas_src>

<mosaic_0001>
module attributes {stable_mosaic.version = 11 : i64} {
  func.func @projection_kernel(%arg0: i32, %arg1: i32, %arg2: memref<2x16x32xf32, #tpu.memory_space<vmem>>, %arg3: memref<16x32xf32, #tpu.memory_space<vmem>>, %arg4: memref<16x1xf32, #tpu.memory_space<vmem>>, %arg5: memref<2x16x16xf32, #tpu.memory_space<vmem>>) attributes {dimension_semantics = [#tpu.dimension_semantics<parallel>, #tpu.dimension_semantics<parallel>], iteration_bounds = array<i64: 1, 1>, scalar_prefetch = 0 : i64, scratch_operands = 0 : i64, tpu.core_type = #tpu.core_type<tc>, window_params = [{transform_indices = @transform_0, window_bounds = array<i64: 2, 16, 32>}, {pipeline_mode = #tpu.pipeline_mode<synchronous>, transform_indices = @transform_1, window_bounds = array<i64: 16, 32>}, {pipeline_mode = #tpu.pipeline_mode<synchronous>, transform_indices = @transform_2, window_bounds = array<i64: 16, 1>}, {transform_indices = @transform_3, window_bounds = array<i64: 2, 16, 16>}]} {
    %c0 = arith.constant 0 : index
    %c0_0 = arith.constant 0 : index
    %0 = vector.load %arg3[%c0, %c0_0] : memref<16x32xf32, #tpu.memory_space<vmem>>, vector<16x32xf32>
    %c0_1 = arith.constant 0 : index
    %c0_2 = arith.constant 0 : index
    %1 = vector.load %arg4[%c0_1, %c0_2] : memref<16x1xf32, #tpu.memory_space<vmem>>, vector<16x1xf32>
    %c0_3 = arith.constant 0 : index
    %c0_4 = arith.constant 0 : index
    %c0_5 = arith.constant 0 : index
    %2 = vector.load %arg2[%c0_3, %c0_4, %c0_5] : memref<2x16x32xf32, #tpu.memory_space<vmem>>, vector<1x16x32xf32>
    %3 = vector.shape_cast %2 : vector<1x16x32xf32> to vector<16x32xf32>
    %cst = arith.constant dense<0.000000e+00> : vector<16xf32>
    %4 = vector.multi_reduction <add>, %3, %cst [1] : vector<16x32xf32> to vector<16xf32>
    %5 = vector.shape_cast %4 : vector<16xf32> to vector<16x1xf32>
    %cst_6 = arith.constant 3.200000e+01 : f32
    %6 = vector.broadcast %cst_6 : f32 to vector<16x1xf32>
    %7 = arith.divf %5, %6 : vector<16x1xf32>
    %8 = vector.broadcast %7 : vector<16x1xf32> to vector<16x32xf32>
    %9 = arith.subf %3, %8 : vector<16x32xf32>
    %10 = arith.mulf %9, %9 : vector<16x32xf32>
    %cst_7 = arith.constant dense<0.000000e+00> : vector<16xf32>
    %11 = vector.multi_reduction <add>, %10, %cst_7 [1] : vector<16x32xf32> to vector<16xf32>
    %12 = vector.shape_cast %11 : vector<16xf32> to vector<16x1xf32>
    %cst_8 = arith.constant 3.200000e+01 : f32
    %13 = vector.broadcast %cst_8 : f32 to vector<16x1xf32>
    %14 = arith.divf %12, %13 : vector<16x1xf32>
    %cst_9 = arith.constant 9.99999974E-6 : f32
    %15 = vector.broadcast %cst_9 : f32 to vector<16x1xf32>
    %16 = arith.addf %14, %15 : vector<16x1xf32>
    %17 = math.rsqrt %16 : vector<16x1xf32>
    %18 = vector.broadcast %17 : vector<16x1xf32> to vector<16x32xf32>
    %19 = arith.mulf %9, %18 : vector<16x32xf32>
    %cst_10 = arith.constant dense<0.000000e+00> : vector<16x16xf32>
    %20 = tpu.matmul %0, %19, %cst_10 {dimension_numbers = #tpu.dot_dimension_numbers<[1], [1], [0], [0], [0, 0, 1, 0], [], []>} : vector<16x32xf32>, vector<16x32xf32>, vector<16x16xf32> -> vector<16x16xf32>
    %21 = vector.broadcast %1 : vector<16x1xf32> to vector<16x16xf32>
    %22 = arith.addf %20, %21 : vector<16x16xf32>
    %cst_11 = arith.constant 0.000000e+00 : f32
    %23 = vector.broadcast %cst_11 : f32 to vector<16x16xf32>
    %24 = arith.maximumf %22, %23 : vector<16x16xf32>
    %c0_12 = arith.constant 0 : index
    %c0_13 = arith.constant 0 : index
    %c0_14 = arith.constant 0 : index
    %25 = vector.load %arg5[%c0_12, %c0_13, %c0_14] : memref<2x16x16xf32, #tpu.memory_space<vmem>>, vector<1x16x16xf32>
    %26 = vector.shape_cast %25 : vector<1x16x16xf32> to vector<16x16xf32>
    %27 = vector.shape_cast %24 : vector<16x16xf32> to vector<1x16x16xf32>
    tpu.vector_store %arg5[%c0_12, %c0_13, %c0_14], %27 {strides = array<i32>} : memref<2x16x16xf32, #tpu.memory_space<vmem>>, vector<1x16x16xf32>,
    %c1 = arith.constant 1 : index
    %c0_15 = arith.constant 0 : index
    %c0_16 = arith.constant 0 : index
    %28 = vector.load %arg2[%c1, %c0_15, %c0_16] : memref<2x16x32xf32, #tpu.memory_space<vmem>>, vector<1x16x32xf32>
    %29 = vector.shape_cast %28 : vector<1x16x32xf32> to vector<16x32xf32>
    %cst_17 = arith.constant dense<0.000000e+00> : vector<16xf32>
    %30 = vector.multi_reduction <add>, %29, %cst_17 [1] : vector<16x32xf32> to vector<16xf32>
    %31 = vector.shape_cast %30 : vector<16xf32> to vector<16x1xf32>
    %cst_18 = arith.constant 3.200000e+01 : f32
    %32 = vector.broadcast %cst_18 : f32 to vector<16x1xf32>
    %33 = arith.divf %31, %32 : vector<16x1xf32>
    %34 = vector.broadcast %33 : vector<16x1xf32> to vector<16x32xf32>
    %35 = arith.subf %29, %34 : vector<16x32xf32>
    %36 = arith.mulf %35, %35 : vector<16x32xf32>
    %cst_19 = arith.constant dense<0.000000e+00> : vector<16xf32>
    %37 = vector.multi_reduction <add>, %36, %cst_19 [1] : vector<16x32xf32> to vector<16xf32>
    %38 = vector.shape_cast %37 : vector<16xf32> to vector<16x1xf32>
    %cst_20 = arith.constant 3.200000e+01 : f32
    %39 = vector.broadcast %cst_20 : f32 to vector<16x1xf32>
    %40 = arith.divf %38, %39 : vector<16x1xf32>
    %cst_21 = arith.constant 9.99999974E-6 : f32
    %41 = vector.broadcast %cst_21 : f32 to vector<16x1xf32>
    %42 = arith.addf %40, %41 : vector<16x1xf32>
    %43 = math.rsqrt %42 : vector<16x1xf32>
    %44 = vector.broadcast %43 : vector<16x1xf32> to vector<16x32xf32>
    %45 = arith.mulf %35, %44 : vector<16x32xf32>
    %cst_22 = arith.constant dense<0.000000e+00> : vector<16x16xf32>
    %46 = tpu.matmul %0, %45, %cst_22 {dimension_numbers = #tpu.dot_dimension_numbers<[1], [1], [0], [0], [0, 0, 1, 0], [], []>} : vector<16x32xf32>, vector<16x32xf32>, vector<16x16xf32> -> vector<16x16xf32>
    %47 = vector.broadcast %1 : vector<16x1xf32> to vector<16x16xf32>
    %48 = arith.addf %46, %47 : vector<16x16xf32>
    %cst_23 = arith.constant 0.000000e+00 : f32
    %49 = vector.broadcast %cst_23 : f32 to vector<16x16xf32>
    %50 = arith.maximumf %48, %49 : vector<16x16xf32>
    %c1_24 = arith.constant 1 : index
    %c0_25 = arith.constant 0 : index
    %c0_26 = arith.constant 0 : index
    %51 = vector.load %arg5[%c1_24, %c0_25, %c0_26] : memref<2x16x16xf32, #tpu.memory_space<vmem>>, vector<1x16x16xf32>
    %52 = vector.shape_cast %51 : vector<1x16x16xf32> to vector<16x16xf32>
    %53 = vector.shape_cast %50 : vector<16x16xf32> to vector<1x16x16xf32>
    tpu.vector_store %arg5[%c1_24, %c0_25, %c0_26], %53 {strides = array<i32>} : memref<2x16x16xf32, #tpu.memory_space<vmem>>, vector<1x16x16xf32>,
    return
  }
  func.func @transform_0(%arg0: i32, %arg1: i32) -> (i32, i32, i32) {
    %c0_i32 = arith.constant 0 : i32
    %c0_i32_0 = arith.constant 0 : i32
    return %arg0, %arg1, %c0_i32 : i32, i32, i32
  }
  func.func @transform_1(%arg0: i32, %arg1: i32) -> (i32, i32) {
    %c0_i32 = arith.constant 0 : i32
    %c0_i32_0 = arith.constant 0 : i32
    %c0_i32_1 = arith.constant 0 : i32
    return %c0_i32, %c0_i32_0 : i32, i32
  }
  func.func @transform_2(%arg0: i32, %arg1: i32) -> (i32, i32) {
    %c0_i32 = arith.constant 0 : i32
    %c0_i32_0 = arith.constant 0 : i32
    %c0_i32_1 = arith.constant 0 : i32
    return %c0_i32, %c0_i32_0 : i32, i32
  }
  func.func @transform_3(%arg0: i32, %arg1: i32) -> (i32, i32, i32) {
    %c0_i32 = arith.constant 0 : i32
    %c0_i32_0 = arith.constant 0 : i32
    return %arg0, %c0_i32, %arg1 : i32, i32, i32
  }
}

</mosaic_0001>

<llo_original>
// kernel: tpu_custom_call.1
$region0: #{tpu_custom_call.1}
  #allocation0 [shape = 'u32[]', space=smem, size = 0x4, offset = 0x4, fixed_abs, tag = 'smem constant byte address 0x4 - core index']
  #allocation1 [shape = 'u32[72,128]{1,0:T(1,128)}', space=vmem, size = 0x9000, scoped, tag = 'internal scratch']
  %s0 = inlined_call_operand.hbm [shape: f32[2,16,32], index: 0, kind: input, shape index: {}]
  %s1 = inlined_call_operand.vmem [shape: f32[16,32], index: 1, kind: input, shape index: {}]
  %s2 = inlined_call_operand.vmem [shape: f32[16,1], index: 2, kind: input, shape index: {}]
  %s3 = inlined_call_operand.hbm [shape: f32[2,16,16], index: 3, kind: output, shape index: {}]
  %s4 = sld [smem:[#allocation0]]
  $region26: #{tpu_custom_call.1} parent=0
    _
  %s6 = ssub.s32 1, %s4
  %s7 = scalar_select 0, %s6, %s4
  $region1: #{tpu_custom_call.1} parent=0
    #allocation2 [shape = 'u8[16384]{0}', space=vmem, size = 0x4000, scoped, tag = 'input window, operand 0, single buffered']
    #allocation3 [shape = 's32[1]{0}', space=sflag, size = 0x4, scoped, tag = 'scoped memory for tpu_custom_call.1']
    #allocation4 [shape = 's32[1]{0}', space=sflag, size = 0x4, scoped, tag = 'scoped memory for tpu_custom_call.1']
    #allocation5 [shape = 'u8[16384]{0}', space=vmem, size = 0x4000, scoped, tag = 'output window, operand 0, single buffered']
    %8 = vsyncpa [#allocation3], 0
    %9 = vsyncpa [#allocation4], 0
    // Predicated region
    $region2: #{tpu_custom_call.1} parent=1 // pred_check
      _
    $region3: #{tpu_custom_call.1} parent=1 // pred_check_branch
      %11 = sbr.rel (0) target = $region5
    $region4: #{tpu_custom_call.1} parent=1 // pred_region
      %13 = vsyncadd [#allocation3], 0
      %s14 = sshll.u32 %s0, 4
      %s15 = int_to_ptr.hbm [resolvable:$true] %s14
      %s16 = sshll.u32 [#allocation2], 4
      %s17 = int_to_ptr.vmem [resolvable:$true] %s16
      %22 = dma.hbm_to_vmem [thread:$0]  %s15, 512, %s17, [#allocation3], 128, 128, 8
    $region5: #{tpu_custom_call.1} parent=1 // pred_fallthru
      _
    // Predicated region
    $region6: #{tpu_custom_call.1} parent=1 // pred_check
      _
    $region7: #{tpu_custom_call.1} parent=1 // pred_check_branch
      %24 = sbr.rel (0) target = $region9
    $region8: #{tpu_custom_call.1} parent=1 // pred_region
      _
    $region9: #{tpu_custom_call.1} parent=1 // pred_fallthru
      _
    // Predicated region
    $region10: #{tpu_custom_call.1} parent=1 // pred_check
      _
    $region11: #{tpu_custom_call.1} parent=1 // pred_check_branch
      %26 = sbr.rel (0) target = $region13
    $region12: #{tpu_custom_call.1} parent=1 // pred_region
      _
    $region13: #{tpu_custom_call.1} parent=1 // pred_fallthru
      _
    // Predicated region
    $region14: #{tpu_custom_call.1} parent=1 // pred_check
      _
    $region15: #{tpu_custom_call.1} parent=1 // pred_check_branch
      %28 = sbr.rel (0) target = $region17
    $region16: #{tpu_custom_call.1} parent=1 // pred_region
      %30 = dma.done [#allocation3], 512
    $region17: #{tpu_custom_call.1} parent=1 // pred_fallthru
      _
    %v31 = vld [vmem:[%s1] sm:$0xff]
    %v32 = vld [vmem:[%s1 + $0x8] sm:$0xff]
    %v33 = vld [vmem:[%s2] sm:$0xff]
    %v34 = vld [vmem:[%s2 + $0x8] sm:$0xff]
    %v35 = vld [vmem:[#allocation2] sm:$0xff]
    %v36 = vld [vmem:[#allocation2 + $0x8] sm:$0xff]
    %vm37 = vcmask 261120
    %v38 = vsel %vm37, %v35, 0.0
    %39 = vadd.xlane.f32.xlu0 %v38
    %v40 = vpop.xlane.xlu0 %39
    %v41 = vsel %vm37, %v36, 0.0
    %42 = vadd.xlane.f32.xlu0 %v41
    %v43 = vpop.xlane.xlu0 %42
    %v44 = vrcp.pop 32.0
    %v45 = vmul.f32 32.0, %v44
    %v46 = vsub.f32 1.0, %v45
    %v47 = vmul.f32 %v44, %v46
    %v48 = vadd.f32 %v44, %v47
    %vm49 = vweird.f32 %v44
    %v50 = vsel %vm49, %v44, %v48
    %v51 = vmul.f32 %v40, %v50
    %v52 = vmul.f32 %v43, %v50
    %v53 = vsub.f32 %v35, %v51
    %v54 = vsub.f32 %v36, %v52
    %v55 = vmul.f32 %v53, %v53
    %v56 = vmul.f32 %v54, %v54
    %v57 = vsel %vm37, %v55, 0.0
    %58 = vadd.xlane.f32.xlu0 %v57
    %v59 = vpop.xlane.xlu0 %58
    %v60 = vsel %vm37, %v56, 0.0
    %61 = vadd.xlane.f32.xlu0 %v60
    %v62 = vpop.xlane.xlu0 %61
    %v63 = vmul.f32 %v59, %v50
    %v64 = vmul.f32 %v62, %v50
    %v65 = vadd.f32 %v63, 1e-05
    %v66 = vadd.f32 %v64, 1e-05
    %v67 = vrsqrt.pop %v65
    %v68 = vmul.f32 %v67, %v65
    %v69 = vmul.f32 %v68, %v67
    %v70 = vmul.f32 0.5, %v69
    %v71 = vsub.f32 1.5, %v70
    %v72 = vmul.f32 %v67, %v71
    %vm73 = vweird.f32 %v65
    %vm74 = vweird.f32 %v67
    %vm75 = vmor %vm73, %vm74
    %v76 = vsel %vm75, %v67, %v72
    %v77 = vrsqrt.pop %v66
    %v78 = vmul.f32 %v77, %v66
    %v79 = vmul.f32 %v78, %v77
    %v80 = vmul.f32 0.5, %v79
    %v81 = vsub.f32 1.5, %v80
    %v82 = vmul.f32 %v77, %v81
    %vm83 = vweird.f32 %v66
    %vm84 = vweird.f32 %v77
    %vm85 = vmor %vm83, %vm84
    %v86 = vsel %vm85, %v77, %v82
    %v87 = vmul.f32 %v53, %v76
    %v88 = vmul.f32 %v54, %v86
    %90 = vset.pattern.permute.xlu0 0
    %91 = vperm.xlu0 %90, %v33
    %v92 = vpop.permute.xlu0 %91
    %95 = vset.pattern.permute.xlu0 0
    %96 = vperm.xlu0 %95, %v34
    %v97 = vpop.permute.xlu0 %96
    %v100 = vsel %vm37, %v31, 0
    %v103 = vsel %vm37, %v32, 0
    %v106 = vsel %vm37, %v87, 0
    %v109 = vsel %vm37, %v88, 0
    %111 = vmatpush.xpose.msra.mxu0 0.0
    %112 = vmatpush.xpose.msra.mxu0 0.0
    %113 = vmatpush.xpose.msra.mxu0 0.0
    %114 = vmatpush.xpose.msra.mxu0 0.0
    %115 = vmatpush.xpose.msra.mxu0 0.0
    %116 = vmatpush.xpose.msra.mxu0 0.0
    %117 = vmatpush.xpose.msra.mxu0 0.0
    %118 = vmatpush.xpose.msra.mxu0 0.0
    %119 = vmatpush.xpose.msra.mxu0 0.0
    %120 = vmatpush.xpose.msra.mxu0 0.0
    %121 = vmatpush.xpose.msra.mxu0 0.0
    %122 = vmatpush.xpose.msra.mxu0 0.0
    %123 = vmatpush.xpose.msra.mxu0 0.0
    %124 = vmatpush.xpose.msra.mxu0 0.0
    %125 = vmatpush.xpose.msra.mxu0 %v109
    %126 = vmatpush.xpose.msra.mxu0 %v106
    %127 = vmatmul.f32.gmra.mxu0 %v100
    %v128 = vpop.f32.mrf.mxu0
    %v129 = vadd.f32 %v92, %v128
    %130 = vmatmul.f32.gmra.mxu0 %v103
    %v131 = vpop.f32.mrf.mxu0
    %v132 = vadd.f32 %v97, %v131
    %133 = vdwg.mxu0
    %v134 = vmax.f32 %v129, 0.0
    %v135 = vmax.f32 %v132, 0.0
    %vm136 = vcmask 130048
    %137 = vst.msk [vmem:[#allocation5] sm:$0xff] %vm136, %v134
    %138 = vst.msk [vmem:[#allocation5 + $0x8] sm:$0xff] %vm136, %v135
    %s139 = scalar_lea.vmem [#allocation2], 16
    %v140 = vld [vmem:[%s139] sm:$0xff]
    %v141 = vld [vmem:[%s139 + $0x8] sm:$0xff]
    %v142 = vsel %vm37, %v140, 0.0
    %143 = vadd.xlane.f32.xlu0 %v142
    %v144 = vpop.xlane.xlu0 %143
    %v145 = vsel %vm37, %v141, 0.0
    %146 = vadd.xlane.f32.xlu0 %v145
    %v147 = vpop.xlane.xlu0 %146
    %v148 = vmul.f32 %v144, %v50
    %v149 = vmul.f32 %v147, %v50
    %v150 = vsub.f32 %v140, %v148
    %v151 = vsub.f32 %v141, %v149
    %v152 = vmul.f32 %v150, %v150
    %v153 = vmul.f32 %v151, %v151
    %v154 = vsel %vm37, %v152, 0.0
    %155 = vadd.xlane.f32.xlu0 %v154
    %v156 = vpop.xlane.xlu0 %155
    %v157 = vsel %vm37, %v153, 0.0
    %158 = vadd.xlane.f32.xlu0 %v157
    %v159 = vpop.xlane.xlu0 %158
    %v160 = vmul.f32 %v156, %v50
    %v161 = vmul.f32 %v159, %v50
    %v162 = vadd.f32 %v160, 1e-05
    %v163 = vadd.f32 %v161, 1e-05
    %v164 = vrsqrt.pop %v162
    %v165 = vmul.f32 %v164, %v162
    %v166 = vmul.f32 %v165, %v164
    %v167 = vmul.f32 0.5, %v166
    %v168 = vsub.f32 1.5, %v167
    %v169 = vmul.f32 %v164, %v168
    %vm170 = vweird.f32 %v162
    %vm171 = vweird.f32 %v164
    %vm172 = vmor %vm170, %vm171
    %v173 = vsel %vm172, %v164, %v169
    %v174 = vrsqrt.pop %v163
    %v175 = vmul.f32 %v174, %v163
    %v176 = vmul.f32 %v175, %v174
    %v177 = vmul.f32 0.5, %v176
    %v178 = vsub.f32 1.5, %v177
    %v179 = vmul.f32 %v174, %v178
    %vm180 = vweird.f32 %v163
    %vm181 = vweird.f32 %v174
    %vm182 = vmor %vm180, %vm181
    %v183 = vsel %vm182, %v174, %v179
    %v184 = vmul.f32 %v150, %v173
    %v185 = vmul.f32 %v151, %v183
    %v187 = vsel %vm37, %v184, 0
    %v190 = vsel %vm37, %v185, 0
    %192 = vmatpush.xpose.msra.mxu0 0.0
    %193 = vmatpush.xpose.msra.mxu0 0.0
    %194 = vmatpush.xpose.msra.mxu0 0.0
    %195 = vmatpush.xpose.msra.mxu0 0.0
    %196 = vmatpush.xpose.msra.mxu0 0.0
    %197 = vmatpush.xpose.msra.mxu0 0.0
    %198 = vmatpush.xpose.msra.mxu0 0.0
    %199 = vmatpush.xpose.msra.mxu0 0.0
    %200 = vmatpush.xpose.msra.mxu0 0.0
    %201 = vmatpush.xpose.msra.mxu0 0.0
    %202 = vmatpush.xpose.msra.mxu0 0.0
    %203 = vmatpush.xpose.msra.mxu0 0.0
    %204 = vmatpush.xpose.msra.mxu0 0.0
    %205 = vmatpush.xpose.msra.mxu0 0.0
    %206 = vmatpush.xpose.msra.mxu0 %v190
    %207 = vmatpush.xpose.msra.mxu0 %v187
    %208 = vmatmul.f32.gmra.mxu0 %v100
    %v209 = vpop.f32.mrf.mxu0
    %v210 = vadd.f32 %v92, %v209
    %211 = vmatmul.f32.gmra.mxu0 %v103
    %v212 = vpop.f32.mrf.mxu0
    %v213 = vadd.f32 %v97, %v212
    %214 = vdwg.mxu0
    %v215 = vmax.f32 %v210, 0.0
    %v216 = vmax.f32 %v213, 0.0
    %s217 = scalar_lea.vmem [#allocation5], 16
    %218 = vst.msk [vmem:[%s217] sm:$0xff] %vm136, %v215
    %219 = vst.msk [vmem:[%s217 + $0x8] sm:$0xff] %vm136, %v216
    // Predicated region
    $region18: #{tpu_custom_call.1} parent=1 // pred_check
      _
    $region19: #{tpu_custom_call.1} parent=1 // pred_check_branch
      %221 = sbr.rel (0) target = $region21
    $region20: #{tpu_custom_call.1} parent=1 // pred_region
      %223 = vsyncadd [#allocation4], 0
      %s224 = sshll.u32 [#allocation5], 4
      %s225 = int_to_ptr.vmem [resolvable:$true] %s224
      %s226 = sshll.u32 %s3, 4
      %s227 = int_to_ptr.hbm [resolvable:$true] %s226
      %232 = dma.vmem_to_hbm [thread:$0]  %s225, 512, %s227, [#allocation4], 128, 128, 8
    $region21: #{tpu_custom_call.1} parent=1 // pred_fallthru
      _
    // Predicated region
    $region22: #{tpu_custom_call.1} parent=1 // pred_check
      _
    $region23: #{tpu_custom_call.1} parent=1 // pred_check_branch
      %234 = sbr.rel (0) target = $region25
    $region24: #{tpu_custom_call.1} parent=1 // pred_region
      %236 = dma.done [#allocation4], 512
    $region25: #{tpu_custom_call.1} parent=1 // pred_fallthru
      _
    %237 = vsyncpa [#allocation3], 1
    %238 = vsyncpa [#allocation4], 1

</llo_original>
